<compile_context>
chip_gen: v6e
topology: v6e:2x2x1
jax: 0.10.0
libtpu: 0.0.40
codegen_flags: <defaults>
</compile_context>

<pallas_src>
import jax
import jax.numpy as jnp
from jax.experimental import pallas as pl
from jax.experimental.pallas import tpu as pltpu


def _round_up(x, m):
    return ((x + m - 1) // m) * m


def _default_token_tile():
    """Per-generation token-tile preference (see perf review)."""
    try:
        kind = jax.devices()[0].device_kind.lower()
    except Exception:
        kind = ""
    if "v5 lite" in kind or "v5e" in kind:
        return 256
    if "v6" in kind or "trillium" in kind:
        return 1024
    if "v7" in kind:
        return 512
    return 512


def _choose_token_tile(n, preferred):
    """Token tile (second-to-last dim): multiple of 8 or full dim."""
    if n <= preferred:
        return n, n  # full-dim block, no padding
    for t in (preferred, 768, 512, 384, 256, 128, 64, 32, 16, 8):
        if t <= preferred and n % t == 0:
            return t, n
    return preferred, _round_up(n, preferred)


def _choose_lane_tile(dim, preferred):
    """Lane-dim tile: multiple of 128 (or full dim); pad dim if needed."""
    if dim <= preferred:
        return dim, dim  # full-dim block, no padding
    for t in range(preferred, 127, -128):
        if dim % t == 0:
            return t, dim
    return preferred, _round_up(dim, preferred)


def _dora_kernel(x_ref, w_ref, scale_ref, o_ref, acc_ref):
    """One GEMM tile with K-accumulation and a row-scale epilogue."""
    k = pl.program_id(2)

    @pl.when(k == 0)
    def _():
        acc_ref[...] = jnp.zeros_like(acc_ref)

    # x: (tn, tk), w: (tout, tk) -- contract dim 1 vs dim 1 (stored layout,
    # no explicit transpose), f32 accumulation on the MXU.
    acc_ref[...] += jax.lax.dot_general(
        x_ref[...], w_ref[...], (((1,), (1,)), ((), ())),
        preferred_element_type=jnp.float32)

    @pl.when(k == pl.num_programs(2) - 1)
    def _():
        # scale_ref is (1, tout) f32, broadcast over the token sublanes.
        o_ref[...] = (scale_ref[...] * acc_ref[...]).astype(o_ref.dtype)


def dora_wrapper_forward(x, w, lora_a, lora_b, magnitude, *, alpha, rank,
                         mxu_dtype=jnp.bfloat16, out_dtype=jnp.bfloat16,
                         token_tile=None, out_tile=512, k_tile=512):
    """Equivalent of `_Wrapper(DoRALinear(...))(x)` for x of shape (B, S, D)."""
    batch, seq, in_dim = x.shape
    out_dim = w.shape[0]
    scaling = float(alpha) / float(rank)

    # ---- Merged weight (forward-only equivalence) + x-independent scale -----
    # The f32 merged weight is needed anyway for the row norm, so reusing it as
    # the single GEMM operand is free.
    w32 = w.astype(jnp.float32)
    adapted = w32 + scaling * (
        lora_b.astype(jnp.float32) @ lora_a.astype(jnp.float32))
    # TODO(synk): no epsilon guard on the row norm (matches PyTorch reference).
    scale = magnitude.astype(jnp.float32) * jax.lax.rsqrt(
        jnp.sum(adapted * adapted, axis=1))
    w_merged = adapted.astype(mxu_dtype)                       # (out, in)

    # ---- Flatten tokens, choose tiles, pad where unavoidable ----------------
    n = batch * seq
    x2d = x.reshape(n, in_dim).astype(mxu_dtype)

    if token_tile is None:
        token_tile = _default_token_tile()
    tn, n_pad = _choose_token_tile(n, token_tile)
    tout, out_pad = _choose_lane_tile(out_dim, out_tile)
    tk, k_pad = _choose_lane_tile(in_dim, k_tile)

    if n_pad != n or k_pad != in_dim:
        x2d = jnp.pad(x2d, ((0, n_pad - n), (0, k_pad - in_dim)))
    if out_pad != out_dim or k_pad != in_dim:
        w_merged = jnp.pad(
            w_merged, ((0, out_pad - out_dim), (0, k_pad - in_dim)))
    if out_pad != out_dim:
        scale = jnp.pad(scale, (0, out_pad - out_dim))  # padded rows -> 0 out
    scale2d = scale.reshape(1, out_pad)

    grid = (out_pad // tout, n_pad // tn, k_pad // tk)

    # ---- Cost estimate reflecting actual re-streaming -----------------------
    flops = 2 * int(n_pad) * int(k_pad) * int(out_pad)
    bytes_accessed = int(
        (out_pad // tout) * x2d.size * x2d.dtype.itemsize        # x re-stream
        + (n_pad // tn) * w_merged.size * w_merged.dtype.itemsize  # W re-stream
        + scale2d.size * 4
        + n_pad * out_pad * jnp.dtype(out_dtype).itemsize)

    out2d = pl.pallas_call(
        _dora_kernel,
        out_shape=jax.ShapeDtypeStruct((n_pad, out_pad), out_dtype),
        grid=grid,
        in_specs=[
            pl.BlockSpec((tn, tk), lambda j, i, k: (i, k)),     # x tile
            pl.BlockSpec((tout, tk), lambda j, i, k: (j, k)),   # merged W tile
            pl.BlockSpec((1, tout), lambda j, i, k: (0, j)),    # scale row
        ],
        out_specs=pl.BlockSpec((tn, tout), lambda j, i, k: (i, j)),
        scratch_shapes=[pltpu.VMEM((tn, tout), jnp.float32)],   # f32 accumulator
        compiler_params=pltpu.CompilerParams(
            dimension_semantics=("parallel", "parallel", "arbitrary")),
        cost_estimate=pl.CostEstimate(
            flops=flops, transcendentals=0, bytes_accessed=bytes_accessed),
    )(x2d, w_merged, scale2d)

    return out2d[:n, :out_dim].reshape(batch, seq, out_dim)


def _reference(x, w, lora_a, lora_b, magnitude, *, alpha, rank):
    scaling = float(alpha) / float(rank)
    adapted = w + scaling * (lora_b @ lora_a)
    norm = jnp.linalg.norm(adapted, axis=1)
    scale = magnitude / norm
    base = jnp.einsum("bsi,oi->bso", x, w)
    lora = jnp.einsum("bsr,or->bso",
                      jnp.einsum("bsi,ri->bsr", x, lora_a), lora_b)
    return scale[None, None, :] * (base + scaling * lora)


if __name__ == "__main__":
    def run_case(case_idx, batch, seq, in_dim, out_dim, rank, alpha, **tiles):
        key = jax.random.fold_in(jax.random.PRNGKey(0), case_idx)
        kx, kw, ka, kb, km = jax.random.split(key, 5)
        x = jax.random.normal(kx, (batch, seq, in_dim), dtype=jnp.float32)
        w = jax.random.normal(kw, (out_dim, in_dim), dtype=jnp.float32) * 0.05
        lora_a = jax.random.normal(ka, (rank, in_dim), dtype=jnp.float32) * 0.05
        lora_b = jax.random.normal(kb, (out_dim, rank), dtype=jnp.float32) * 0.05
        magnitude = jax.random.uniform(km, (out_dim,), dtype=jnp.float32) + 0.5

        out = dora_wrapper_forward(x, w, lora_a, lora_b, magnitude,
                                   alpha=alpha, rank=rank, **tiles)
        out = jax.block_until_ready(out)

        ref = _reference(x, w, lora_a, lora_b, magnitude, alpha=alpha, rank=rank)
        assert out.shape == ref.shape
        out32 = out.astype(jnp.float32)
        # bf16 MXU inputs + bf16 output with f32 accumulation.
        assert jnp.allclose(out32, ref, atol=5e-2, rtol=5e-2), (
            float(jnp.max(jnp.abs(out32 - ref))))

    # Small single-block case (matches compare_dora.py scale).
    run_case(0, batch=2, seq=8, in_dim=32, out_dim=32, rank=4, alpha=8)
    # Multi-block case: exercises K accumulation, out-dim tiling and padded n.
    run_case(1, batch=3, seq=16, in_dim=256, out_dim=384, rank=8, alpha=16,
             token_tile=32, out_tile=128, k_tile=128)

    print("KERNEL_OK")
</pallas_src>

<mosaic_0001>
module attributes {stable_mosaic.version = 11 : i64} {
  func.func @_dora_kernel(%arg0: i32, %arg1: i32, %arg2: i32, %arg3: memref<16x32xbf16, #tpu.memory_space<vmem>>, %arg4: memref<32x32xbf16, #tpu.memory_space<vmem>>, %arg5: memref<1x32xf32, #tpu.memory_space<vmem>>, %arg6: memref<16x32xbf16, #tpu.memory_space<vmem>>, %arg7: memref<16x32xf32, #tpu.memory_space<vmem>>) attributes {dimension_semantics = [#tpu.dimension_semantics<parallel>, #tpu.dimension_semantics<parallel>, #tpu.dimension_semantics<arbitrary>], iteration_bounds = array<i64: 1, 1, 1>, scalar_prefetch = 0 : i64, scratch_operands = 1 : i64, tpu.core_type = #tpu.core_type<tc>, window_params = [{transform_indices = @transform_0, window_bounds = array<i64: 16, 32>}, {transform_indices = @transform_1, window_bounds = array<i64: 32, 32>}, {transform_indices = @transform_2, window_bounds = array<i64: 1, 32>}, {transform_indices = @transform_3, window_bounds = array<i64: 16, 32>}]} {
    %c0_i32 = arith.constant 0 : i32
    %0 = arith.cmpi eq, %arg2, %c0_i32 : i32
    %1 = arith.extui %0 : i1 to i32
    %c0_i32_0 = arith.constant 0 : i32
    %2 = arith.cmpi ne, %1, %c0_i32_0 : i32
    scf.if %2 {
      %cst_10 = arith.constant 0.000000e+00 : f32
      %12 = vector.broadcast %cst_10 : f32 to vector<16x32xf32>
      %c0_11 = arith.constant 0 : index
      %c0_12 = arith.constant 0 : index
      %13 = vector.load %arg7[%c0_11, %c0_12] : memref<16x32xf32, #tpu.memory_space<vmem>>, vector<16x32xf32>
      tpu.vector_store %arg7[%c0_11, %c0_12], %12 {strides = array<i32>} : memref<16x32xf32, #tpu.memory_space<vmem>>, vector<16x32xf32>,
    } else {
    }
    %c0 = arith.constant 0 : index
    %c0_1 = arith.constant 0 : index
    %3 = vector.load %arg7[%c0, %c0_1] : memref<16x32xf32, #tpu.memory_space<vmem>>, vector<16x32xf32>
    %c0_2 = arith.constant 0 : index
    %c0_3 = arith.constant 0 : index
    %4 = vector.load %arg3[%c0_2, %c0_3] : memref<16x32xbf16, #tpu.memory_space<vmem>>, vector<16x32xbf16>
    %c0_4 = arith.constant 0 : index
    %c0_5 = arith.constant 0 : index
    %5 = vector.load %arg4[%c0_4, %c0_5] : memref<32x32xbf16, #tpu.memory_space<vmem>>, vector<32x32xbf16>
    %cst = arith.constant dense<0.000000e+00> : vector<16x32xf32>
    %6 = tpu.matmul %4, %5, %cst {dimension_numbers = #tpu.dot_dimension_numbers<[1], [1], [0], [0], [0, 0, 1, 0], [], []>} : vector<16x32xbf16>, vector<32x32xbf16>, vector<16x32xf32> -> vector<16x32xf32>
    %7 = arith.addf %3, %6 : vector<16x32xf32>
    %c0_6 = arith.constant 0 : index
    %c0_7 = arith.constant 0 : index
    %8 = vector.load %arg7[%c0_6, %c0_7] : memref<16x32xf32, #tpu.memory_space<vmem>>, vector<16x32xf32>
    tpu.vector_store %arg7[%c0_6, %c0_7], %7 {strides = array<i32>} : memref<16x32xf32, #tpu.memory_space<vmem>>, vector<16x32xf32>,
    %c0_i32_8 = arith.constant 0 : i32
    %9 = arith.cmpi eq, %arg2, %c0_i32_8 : i32
    %10 = arith.extui %9 : i1 to i32
    %c0_i32_9 = arith.constant 0 : i32
    %11 = arith.cmpi ne, %10, %c0_i32_9 : i32
    scf.if %11 {
      %c0_10 = arith.constant 0 : index
      %c0_11 = arith.constant 0 : index
      %12 = vector.load %arg5[%c0_10, %c0_11] : memref<1x32xf32, #tpu.memory_space<vmem>>, vector<1x32xf32>
      %c0_12 = arith.constant 0 : index
      %c0_13 = arith.constant 0 : index
      %13 = vector.load %arg7[%c0_12, %c0_13] : memref<16x32xf32, #tpu.memory_space<vmem>>, vector<16x32xf32>
      %14 = vector.broadcast %12 : vector<1x32xf32> to vector<16x32xf32>
      %15 = arith.mulf %14, %13 : vector<16x32xf32>
      %16 = arith.truncf %15 : vector<16x32xf32> to vector<16x32xbf16>
      %c0_14 = arith.constant 0 : index
      %c0_15 = arith.constant 0 : index
      %17 = vector.load %arg6[%c0_14, %c0_15] : memref<16x32xbf16, #tpu.memory_space<vmem>>, vector<16x32xbf16>
      tpu.vector_store %arg6[%c0_14, %c0_15], %16 {strides = array<i32>} : memref<16x32xbf16, #tpu.memory_space<vmem>>, vector<16x32xbf16>,
    } else {
    }
    return
  }
  func.func @transform_0(%arg0: i32, %arg1: i32, %arg2: i32) -> (i32, i32) {
    %c0_i32 = arith.constant 0 : i32
    return %arg1, %arg2 : i32, i32
  }
  func.func @transform_1(%arg0: i32, %arg1: i32, %arg2: i32) -> (i32, i32) {
    %c0_i32 = arith.constant 0 : i32
    return %arg0, %arg2 : i32, i32
  }
  func.func @transform_2(%arg0: i32, %arg1: i32, %arg2: i32) -> (i32, i32) {
    %c0_i32 = arith.constant 0 : i32
    %c0_i32_0 = arith.constant 0 : i32
    return %c0_i32, %arg0 : i32, i32
  }
  func.func @transform_3(%arg0: i32, %arg1: i32, %arg2: i32) -> (i32, i32) {
    %c0_i32 = arith.constant 0 : i32
    return %arg1, %arg0 : i32, i32
  }
}

</mosaic_0001>

<llo_original>
// kernel: tpu_custom_call.1
$region0: #{tpu_custom_call.1}
  #allocation0 [shape = 'u32[]', space=smem, size = 0x4, offset = 0x4, fixed_abs, tag = 'smem constant byte address 0x4 - core index']
  #allocation1 [shape = 'u32[144,128]{1,0:T(1,128)}', space=vmem, size = 0x12000, scoped, tag = 'internal scratch']
  #allocation2 [shape = 'f32[16,32]{1,0:T(8,128)}', space=vmem, size = 0x2000, scoped, tag = 'scratch operand']
  %s0 = inlined_call_operand.hbm [shape: bf16[16,32], index: 0, kind: input, shape index: {}]
  %s1 = inlined_call_operand.hbm [shape: bf16[32,32], index: 1, kind: input, shape index: {}]
  %s2 = inlined_call_operand.vmem [shape: f32[1,32], index: 2, kind: input, shape index: {}]
  %s3 = inlined_call_operand.hbm [shape: bf16[16,32], index: 3, kind: output, shape index: {}]
  %s4 = sld [smem:[#allocation0]]
  $region38: #{tpu_custom_call.1} parent=0
    _
  %s6 = ssub.s32 1, %s4
  %s7 = scalar_select 0, %s6, %s4
  $region1: #{tpu_custom_call.1} parent=0
    #allocation3 [shape = 'u8[4096]{0}', space=vmem, size = 0x1000, scoped, tag = 'input window, operand 0, single buffered']
    #allocation4 [shape = 's32[1]{0}', space=sflag, size = 0x4, scoped, tag = 'scoped memory for tpu_custom_call.1']
    #allocation5 [shape = 's32[1]{0}', space=sflag, size = 0x4, scoped, tag = 'scoped memory for tpu_custom_call.1']
    #allocation6 [shape = 'u8[8192]{0}', space=vmem, size = 0x2000, scoped, tag = 'input window, operand 1, single buffered']
    #allocation7 [shape = 's32[1]{0}', space=sflag, size = 0x4, scoped, tag = 'scoped memory for tpu_custom_call.1']
    #allocation8 [shape = 'u8[4096]{0}', space=vmem, size = 0x1000, scoped, tag = 'output window, operand 0, single buffered']
    %8 = vsyncpa [#allocation4], 0
    %9 = vsyncpa [#allocation7], 0
    %10 = vsyncpa [#allocation5], 0
    // Predicated region
    $region2: #{tpu_custom_call.1} parent=1 // pred_check
      _
    $region3: #{tpu_custom_call.1} parent=1 // pred_check_branch
      %12 = sbr.rel (0) target = $region5
    $region4: #{tpu_custom_call.1} parent=1 // pred_region
      %s14 = ssub.s32 128, 128
      %15 = vsyncadd [#allocation4], %s14
      %s16 = sshll.u32 [#allocation3], 4
      %s17 = int_to_ptr.vmem [resolvable:$true] %s16
      %22 = dma.hbm_to_vmem [thread:$0]  %s0, 128, %s17, [#allocation4], 64, 64, 4
    $region5: #{tpu_custom_call.1} parent=1 // pred_fallthru
      _
    // Predicated region
    $region6: #{tpu_custom_call.1} parent=1 // pred_check
      _
    $region7: #{tpu_custom_call.1} parent=1 // pred_check_branch
      %24 = sbr.rel (0) target = $region9
    $region8: #{tpu_custom_call.1} parent=1 // pred_region
      %s26 = ssub.s32 256, 256
      %27 = vsyncadd [#allocation7], %s26
      %s28 = sshll.u32 [#allocation6], 4
      %s29 = int_to_ptr.vmem [resolvable:$true] %s28
      %34 = dma.hbm_to_vmem [thread:$0]  %s1, 256, %s29, [#allocation7], 64, 64, 4
    $region9: #{tpu_custom_call.1} parent=1 // pred_fallthru
      _
    // Predicated region
    $region10: #{tpu_custom_call.1} parent=1 // pred_check
      _
    $region11: #{tpu_custom_call.1} parent=1 // pred_check_branch
      %36 = sbr.rel (0) target = $region13
    $region12: #{tpu_custom_call.1} parent=1 // pred_region
      _
    $region13: #{tpu_custom_call.1} parent=1 // pred_fallthru
      _
    // Predicated region
    $region14: #{tpu_custom_call.1} parent=1 // pred_check
      _
    $region15: #{tpu_custom_call.1} parent=1 // pred_check_branch
      %38 = sbr.rel (0) target = $region17
    $region16: #{tpu_custom_call.1} parent=1 // pred_region
      %39 = dma.done [#allocation4], 128
    $region17: #{tpu_custom_call.1} parent=1 // pred_fallthru
      _
    // Predicated region
    $region18: #{tpu_custom_call.1} parent=1 // pred_check
      _
    $region19: #{tpu_custom_call.1} parent=1 // pred_check_branch
      %41 = sbr.rel (0) target = $region21
    $region20: #{tpu_custom_call.1} parent=1 // pred_region
      %42 = dma.done [#allocation7], 256
    $region21: #{tpu_custom_call.1} parent=1 // pred_fallthru
      _
    %p44 = scmp.eq.s32.totalorder 0, 0
    // Predicated region
    $region22: #{tpu_custom_call.1} parent=1 // pred_check
      %p45 = pneg %p44
    $region23: #{tpu_custom_call.1} parent=1 // pred_check_branch
      %47 = sbr.rel (%p45) target = $region25
    $region24: #{tpu_custom_call.1} parent=1 // pred_region
      %vm48 = vcmask 261120
      %49 = vst.msk [vmem:[#allocation2] sm:$0xff] %vm48, 0.0
      %50 = vst.msk [vmem:[#allocation2 + $0x8] sm:$0xff] %vm48, 0.0
    $region25: #{tpu_custom_call.1} parent=1 // pred_fallthru
      _
    %v51 = vld [vmem:[#allocation2] sm:$0xff]
    %v52 = vld [vmem:[#allocation2 + $0x8] sm:$0xff]
    %v53 = vld [vmem:[#allocation3] sm:$0xf]
    %v54 = vld [vmem:[#allocation3 + $0x4] sm:$0xf]
    %v55 = vld [vmem:[#allocation6] sm:$0xf]
    %v56 = vld [vmem:[#allocation6 + $0x4] sm:$0xf]
    %v57 = vld [vmem:[#allocation6 + $0x8] sm:$0xf]
    %v58 = vld [vmem:[#allocation6 + $0xc] sm:$0xf]
    %v61 = vunpack.c.l.b16 %v53
    %v62 = vunpack.c.l.b16 %v54
    %v63 = vpack.c.b16 %v62, %v61
    %v68 = vunpack.c.l.b16 %v55
    %v69 = vunpack.c.l.b16 %v56
    %v70 = vunpack.c.l.b16 %v57
    %v71 = vunpack.c.l.b16 %v58
    %v72 = vpack.c.b16 %v69, %v68
    %v73 = vpack.c.b16 %v71, %v70
    %vm74 = vcmask 261120
    %v76 = vsel %vm74, %v63, 0
    %v79 = vsel %vm74, %v72, 0
    %v82 = vsel %vm74, %v73, 0
    %84 = vmatprep.subr.bf16.mxu0 0
    %85 = vmatpush1.bf16.xpose.msra.mxu0 0
    %86 = vmatprep.subr.bf16.mxu0 0
    %87 = vmatpush1.bf16.xpose.msra.mxu0 0
    %88 = vmatprep.subr.bf16.mxu0 0
    %89 = vmatpush1.bf16.xpose.msra.mxu0 0
    %90 = vmatprep.subr.bf16.mxu0 0
    %91 = vmatpush1.bf16.xpose.msra.mxu0 0
    %92 = vmatprep.subr.bf16.mxu0 0
    %93 = vmatpush1.bf16.xpose.msra.mxu0 0
    %94 = vmatprep.subr.bf16.mxu0 0
    %95 = vmatpush1.bf16.xpose.msra.mxu0 0
    %96 = vmatprep.subr.bf16.mxu0 0
    %97 = vmatpush1.bf16.xpose.msra.mxu0 %v82
    %98 = vmatprep.subr.bf16.mxu0 0
    %99 = vmatpush1.bf16.xpose.msra.mxu0 %v79
    %100 = vmatprep.subr.bf16.mxu0 0
    %101 = vmatpush2.bf16.xpose.msra.mxu0 0
    %102 = vmatprep.subr.bf16.mxu0 0
    %103 = vmatpush2.bf16.xpose.msra.mxu0 0
    %104 = vmatprep.subr.bf16.mxu0 0
    %105 = vmatpush2.bf16.xpose.msra.mxu0 0
    %106 = vmatprep.subr.bf16.mxu0 0
    %107 = vmatpush2.bf16.xpose.msra.mxu0 0
    %108 = vmatprep.subr.bf16.mxu0 0
    %109 = vmatpush2.bf16.xpose.msra.mxu0 0
    %110 = vmatprep.subr.bf16.mxu0 0
    %111 = vmatpush2.bf16.xpose.msra.mxu0 0
    %112 = vmatprep.subr.bf16.mxu0 0
    %113 = vmatpush2.bf16.xpose.msra.mxu0 0
    %114 = vmatprep.subr.bf16.mxu0 0
    %115 = vmatpush2.bf16.xpose.msra.mxu0 0
    %116 = vmatprep.mubr.bf16.mxu0 0
    %117 = vmatmul.mubr.bf16.gmra.mxu0 %v76
    %v118 = vpop.f32.mrf.mxu0
    %v119 = vadd.f32 0.0, %v118
    %v120 = vpop.f32.mrf.mxu0
    %v121 = vpop.f32.mrf.mxu0
    %v122 = vadd.f32 0.0, %v121
    %v123 = vpop.f32.mrf.mxu0
    %124 = vdwg.mxu0
    %v125 = vadd.f32 %v51, %v119
    %v126 = vadd.f32 %v52, %v122
    %127 = vst.msk [vmem:[#allocation2] sm:$0xff] %vm74, %v125
    %128 = vst.msk [vmem:[#allocation2 + $0x8] sm:$0xff] %vm74, %v126
    // Predicated region
    $region26: #{tpu_custom_call.1} parent=1 // pred_check
      %p129 = pneg %p44
    $region27: #{tpu_custom_call.1} parent=1 // pred_check_branch
      %131 = sbr.rel (%p129) target = $region29
    $region28: #{tpu_custom_call.1} parent=1 // pred_region
      %v132 = vld [vmem:[%s2] sm:$0x1]
      %v133 = vld [vmem:[#allocation2] sm:$0xff]
      %v134 = vld [vmem:[#allocation2 + $0x8] sm:$0xff]
      %v136 = vlaneseq
      %v137 = vshrl.u32 %v136, 7
      %v138 = vsub.s32 0, %v137
      %v139 = vrot.slane %v132, %v138
      %v141 = vmul.f32 %v139, %v133
      %v142 = vmul.f32 %v139, %v134
      %v143 = vpack.c.bf16 %v142, %v141
      %v145 = vunpack.c.l.b16 %v143
      %v146 = vunpack.c.h.b16 %v143
      %v147 = vpack.c.b16 %v145, %v145
      %v148 = vpack.c.b16 %v146, %v146
      %vm151 = vcmask 257024
      %152 = vst.msk [vmem:[#allocation8] sm:$0xf] %vm151, %v147
      %153 = vst.msk [vmem:[#allocation8 + $0x4] sm:$0xf] %vm151, %v148
    $region29: #{tpu_custom_call.1} parent=1 // pred_fallthru
      _
    // Predicated region
    $region30: #{tpu_custom_call.1} parent=1 // pred_check
      _
    $region31: #{tpu_custom_call.1} parent=1 // pred_check_branch
      %155 = sbr.rel (0) target = $region33
    $region32: #{tpu_custom_call.1} parent=1 // pred_region
      %s157 = ssub.s32 128, 128
      %158 = vsyncadd [#allocation5], %s157
      %s159 = sshll.u32 [#allocation8], 4
      %s160 = int_to_ptr.vmem [resolvable:$true] %s159
      %165 = dma.vmem_to_hbm [thread:$0]  %s160, 128, %s3, [#allocation5], 64, 64, 4
    $region33: #{tpu_custom_call.1} parent=1 // pred_fallthru
      _
    // Predicated region
    $region34: #{tpu_custom_call.1} parent=1 // pred_check
      _
    $region35: #{tpu_custom_call.1} parent=1 // pred_check_branch
      %167 = sbr.rel (0) target = $region37
    $region36: #{tpu_custom_call.1} parent=1 // pred_region
      %168 = dma.done [#allocation5], 128
    $region37: #{tpu_custom_call.1} parent=1 // pred_fallthru
      _
    %169 = vsyncpa [#allocation4], 1
    %170 = vsyncpa [#allocation7], 1
    %171 = vsyncpa [#allocation5], 1

</llo_original>
